<compile_context>
chip_gen: v7x
topology: tpu7x:2x2x1
jax: 0.10.0
libtpu: 0.0.40
codegen_flags: <defaults>
</compile_context>

<pallas_src>
import jax
import jax.numpy as jnp
from jax.experimental import pallas as pl
from jax.experimental.pallas import tpu as pltpu


# ----------------------------------------------------------------------------
# Pallas kernel
# ----------------------------------------------------------------------------
def _subsampled_padding_mask_kernel(value_ref, sel_ref, mask_ref):
    """value_ref: [TN, TS_in]    int32  (batch on sublanes, sequence on lanes)
       sel_ref  : [TS_in, TS_out] bf16  one-hot selection (k == j*stride)
       mask_ref : [TN, TS_out]   int8   (1 where sub-sampled token == 0)"""
    eq0 = (value_ref[...] == 0).astype(jnp.bfloat16)             # [TN, TS_in]
    # MXU one-hot "gather": picks input column j*stride for output column j.
    sub = jnp.dot(eq0, sel_ref[...],
                  preferred_element_type=jnp.float32)             # [TN, TS_out]
    mask_ref[...] = (sub > 0.5).astype(jnp.int8)


# ----------------------------------------------------------------------------
# Tile selection
# ----------------------------------------------------------------------------
def _pick_tiles(n, s, s_out, stride, vmem_budget=12 * 1024 * 1024):
    """Tile sizes obeying the (8,128)/full-extent rule for all three blocks,
    with a double-buffered VMEM footprint under `vmem_budget`."""
    # Sequence tiles: lane-dense output (multiple of 128) or full extent.
    if s_out >= 128:
        ts_out = min(256, (s_out // 128) * 128)   # 128 or 256 lanes
    else:
        ts_out = s_out                            # full extent (small seq)
    grid_s = pl.cdiv(s_out, ts_out)
    # When a single seq tile covers everything, take the full input extent
    # (always legal, handles S not divisible by stride). Otherwise the input
    # tile is ts_out*stride lanes (a multiple of 128).
    ts_in = s if grid_s == 1 else ts_out * stride

    # Batch tiles: multiple of 32 (int8 output sublane packing) or full extent.
    if n >= 32:
        tn = 32 * min(8, n // 32)                 # up to 256 rows / tile
    else:
        tn = n                                    # full extent

    def footprint(tn_):
        # 2x input buffers (int32) + resident sel (bf16) + 2x output (int8)
        return 2 * tn_ * ts_in * 4 + ts_in * ts_out * 2 + 2 * tn_ * ts_out

    while tn > 32 and footprint(tn) > vmem_budget:
        tn //= 2

    grid_n = pl.cdiv(n, tn)
    return tn, grid_n, ts_in, ts_out, grid_s


# ----------------------------------------------------------------------------
# Wrapper (mirrors MultiConvolutionEmbeddingA.forward)
# ----------------------------------------------------------------------------
def multi_conv_embedding_a_forward(value, depth, position, *, conv_size):
    """`depth` / `position` are accepted for signature parity but unused: the
    reference forward returns the padding mask before touching the embedding
    or convolutions (dead code)."""
    del depth, position
    stride = conv_size ** 2
    n, s = value.shape
    s_out = -(-s // stride)                       # ceil(S / stride)

    tn, grid_n, ts_in, ts_out, grid_s = _pick_tiles(n, s, s_out, stride)

    v32 = value.astype(jnp.int32)
    # One-hot selection matrix: sel[k, j] = 1 iff k == j*stride (exact in bf16).
    sel = (jnp.arange(ts_in, dtype=jnp.int32)[:, None]
           == (jnp.arange(ts_out, dtype=jnp.int32) * stride)[None, :]
           ).astype(jnp.bfloat16)

    mask_i8 = pl.pallas_call(
        _subsampled_padding_mask_kernel,
        out_shape=jax.ShapeDtypeStruct((n, s_out), jnp.int8),
        grid=(grid_n, grid_s),
        in_specs=[
            # value tile: rows = batch tile, lanes = ts_out*stride sequence slab
            pl.BlockSpec((tn, ts_in), lambda i, j: (i, j)),
            # selection matrix: same block every step -> stays resident in VMEM
            pl.BlockSpec((ts_in, ts_out), lambda i, j: (0, 0)),
        ],
        out_specs=pl.BlockSpec((tn, ts_out), lambda i, j: (i, j)),
        compiler_params=pltpu.CompilerParams(
            dimension_semantics=("parallel", "parallel")),
        cost_estimate=pl.CostEstimate(
            flops=int(2 * n * s_out * ts_in),
            transcendentals=0,
            bytes_accessed=int(n * s * 4 + n * s_out + ts_in * ts_out * 2)),
    )(v32, sel)

    # Reference returns a bool tensor of shape [N, S_out].
    return mask_i8.astype(jnp.bool_)


# ----------------------------------------------------------------------------
# Deterministic parameter init (mirrors __init__; parameters are NEVER used
# because the reference forward early-returns the padding mask).
# ----------------------------------------------------------------------------
def init_params(key, num_vocab, embed_dim, conv_size):
    # TODO(synk): Embedding / Convolution parameters are dead code in the
    # reference forward; created here only to mirror __init__ shapes.
    k0, k1, k2 = jax.random.split(key, 3)
    e4 = embed_dim // 4
    e2 = embed_dim // 2
    return {
        "embedding_table": jax.random.normal(k0, (num_vocab + 1, e4), jnp.float32),
        "conv1_w": jax.random.normal(k1, (e2, e4, conv_size), jnp.float32),
        "conv1_b": jnp.zeros((e2,), jnp.float32),
        "conv2_w": jax.random.normal(k2, (embed_dim, e2, conv_size), jnp.float32),
        "conv2_b": jnp.zeros((embed_dim,), jnp.float32),
    }


# ----------------------------------------------------------------------------
# Demo / self-check
# ----------------------------------------------------------------------------
if __name__ == "__main__":
    num_vocab = 16
    embed_dim = 32
    resolution = 32
    spatial_dim = 2
    conv_size = 2            # sub-sampling stride = conv_size**2 = 4

    N, S = 8, 512            # batch, sequence length  ->  S_out = 128

    key = jax.random.PRNGKey(0)
    kv, kd, kp, kparam = jax.random.split(key, 4)

    # value tokens in [0, num_vocab]; '0' is the padding token.
    value = jax.random.randint(kv, (N, S), 0, num_vocab + 1, dtype=jnp.int32)
    depth = jax.random.randint(kd, (N, S), 1, 5, dtype=jnp.int32)
    position = jax.random.randint(kp, (N, S, spatial_dim), 0, resolution,
                                  dtype=jnp.int32)

    _ = init_params(kparam, num_vocab, embed_dim, conv_size)  # dead code in ref

    mask = multi_conv_embedding_a_forward(value, depth, position,
                                          conv_size=conv_size)
    mask = jax.block_until_ready(mask)

    # Reference: padding_mask(value[:, ::conv_size**2]) == (sub-sampled == 0)
    ref = (value[:, :: conv_size ** 2] == 0)
    assert mask.shape == ref.shape, (mask.shape, ref.shape)
    assert mask.dtype == jnp.bool_
    assert bool(jnp.all(mask == ref))

    print("KERNEL_OK")
</pallas_src>

<mosaic_0001>
module attributes {stable_mosaic.version = 11 : i64} {
  func.func @_subsampled_padding_mask_kernel(%arg0: i32, %arg1: i32, %arg2: memref<8x512xi32, #tpu.memory_space<vmem>>, %arg3: memref<512x128xbf16, #tpu.memory_space<vmem>>, %arg4: memref<8x128xi8, #tpu.memory_space<vmem>>) attributes {dimension_semantics = [#tpu.dimension_semantics<parallel>, #tpu.dimension_semantics<parallel>], iteration_bounds = array<i64: 1, 1>, scalar_prefetch = 0 : i64, scratch_operands = 0 : i64, tpu.core_type = #tpu.core_type<tc>, window_params = [{transform_indices = @transform_0, window_bounds = array<i64: 8, 512>}, {pipeline_mode = #tpu.pipeline_mode<synchronous>, transform_indices = @transform_1, window_bounds = array<i64: 512, 128>}, {transform_indices = @transform_2, window_bounds = array<i64: 8, 128>}]} {
    %c0 = arith.constant 0 : index
    %c0_0 = arith.constant 0 : index
    %0 = vector.load %arg2[%c0, %c0_0] : memref<8x512xi32, #tpu.memory_space<vmem>>, vector<8x512xi32>
    %c0_i32 = arith.constant 0 : i32
    %1 = vector.broadcast %c0_i32 : i32 to vector<8x512xi32>
    %2 = arith.cmpi eq, %0, %1 : vector<8x512xi32>
    %3 = arith.extui %2 : vector<8x512xi1> to vector<8x512xi32>
    %4 = arith.sitofp %3 : vector<8x512xi32> to vector<8x512xf32>
    %5 = arith.truncf %4 : vector<8x512xf32> to vector<8x512xbf16>
    %c0_1 = arith.constant 0 : index
    %c0_2 = arith.constant 0 : index
    %6 = vector.load %arg3[%c0_1, %c0_2] : memref<512x128xbf16, #tpu.memory_space<vmem>>, vector<512x128xbf16>
    %cst = arith.constant dense<0.000000e+00> : vector<8x128xf32>
    %7 = tpu.matmul %5, %6, %cst {dimension_numbers = #tpu.dot_dimension_numbers<[1], [0], [0], [1], [0, 0, 1, 1], [], []>} : vector<8x512xbf16>, vector<512x128xbf16>, vector<8x128xf32> -> vector<8x128xf32>
    %cst_3 = arith.constant 5.000000e-01 : f32
    %8 = vector.broadcast %cst_3 : f32 to vector<8x128xf32>
    %9 = arith.cmpf ogt, %7, %8 : vector<8x128xf32>
    %10 = arith.extui %9 : vector<8x128xi1> to vector<8x128xi8>
    %c0_4 = arith.constant 0 : index
    %c0_5 = arith.constant 0 : index
    %11 = vector.load %arg4[%c0_4, %c0_5] : memref<8x128xi8, #tpu.memory_space<vmem>>, vector<8x128xi8>
    tpu.vector_store %arg4[%c0_4, %c0_5], %10 {strides = array<i32>} : memref<8x128xi8, #tpu.memory_space<vmem>>, vector<8x128xi8>,
    return
  }
  func.func @transform_0(%arg0: i32, %arg1: i32) -> (i32, i32) {
    %c0_i32 = arith.constant 0 : i32
    return %arg0, %arg1 : i32, i32
  }
  func.func @transform_1(%arg0: i32, %arg1: i32) -> (i32, i32) {
    %c0_i32 = arith.constant 0 : i32
    %c0_i32_0 = arith.constant 0 : i32
    %c0_i32_1 = arith.constant 0 : i32
    return %c0_i32, %c0_i32_0 : i32, i32
  }
  func.func @transform_2(%arg0: i32, %arg1: i32) -> (i32, i32) {
    %c0_i32 = arith.constant 0 : i32
    return %arg0, %arg1 : i32, i32
  }
}

</mosaic_0001>

<llo_original>
// kernel: tpu_custom_call.1
$region0: #{tpu_custom_call.1}
  #allocation0 [shape = 'u32[]', space=smem, size = 0x4, offset = 0x4, fixed_abs, tag = 'smem constant byte address 0x4 - core index']
  #allocation1 [shape = 'u32[144,128]{1,0:T(1,128)}', space=vmem, size = 0x12000, scoped, tag = 'internal scratch']
  %s0 = inlined_call_operand.hbm [shape: s32[8,512], index: 0, kind: input, shape index: {}]
  %s1 = inlined_call_operand.hbm [shape: bf16[512,128], index: 1, kind: input, shape index: {}]
  %s2 = inlined_call_operand.hbm [shape: s8[8,128], index: 2, kind: output, shape index: {}]
  %s3 = sld [smem:[#allocation0]]
  $region26: #{tpu_custom_call.1} parent=0
    _
  %s5 = ssub.s32 1, %s3
  %s6 = scalar_select 0, %s5, %s3
  $region1: #{tpu_custom_call.1} parent=0
    #allocation2 [shape = 'u8[16384]{0}', space=vmem, size = 0x4000, scoped, tag = 'input window, operand 0, single buffered']
    #allocation3 [shape = 's32[1]{0}', space=sflag, size = 0x4, scoped, tag = 'scoped memory for tpu_custom_call.1']
    #allocation4 [shape = 's32[1]{0}', space=sflag, size = 0x4, scoped, tag = 'scoped memory for tpu_custom_call.1']
    #allocation5 [shape = 'u8[131072]{0}', space=vmem, size = 0x20000, scoped, tag = 'input window, operand 1, single buffered']
    #allocation6 [shape = 's32[1]{0}', space=sflag, size = 0x4, scoped, tag = 'scoped memory for tpu_custom_call.1']
    #allocation7 [shape = 'u8[1024]{0}', space=vmem, size = 0x400, scoped, tag = 'output window, operand 0, single buffered']
    %7 = vsyncpa [#allocation3], 0
    %8 = vsyncpa [#allocation6], 0
    %9 = vsyncpa [#allocation4], 0
    // Predicated region
    $region2: #{tpu_custom_call.1} parent=1 // pred_check
      _
    $region3: #{tpu_custom_call.1} parent=1 // pred_check_branch
      %11 = sbr.rel (0) target = $region5
    $region4: #{tpu_custom_call.1} parent=1 // pred_region
      %s13 = ssub.s32 512, 512
      %14 = vsyncadd [#allocation3], %s13
      %s16 = sshll.u32 [#allocation2], 4
      %s17 = int_to_ptr.vmem [resolvable:$true] %s16
      %19 = dma.hbm_to_vmem [thread:$0]  %s0, 512, %s17, [#allocation3]
    $region5: #{tpu_custom_call.1} parent=1 // pred_fallthru
      _
    // Predicated region
    $region6: #{tpu_custom_call.1} parent=1 // pred_check
      _
    $region7: #{tpu_custom_call.1} parent=1 // pred_check_branch
      %21 = sbr.rel (0) target = $region9
    $region8: #{tpu_custom_call.1} parent=1 // pred_region
      %s23 = ssub.s32 4096, 4096
      %24 = vsyncadd [#allocation6], %s23
      %s25 = sshll.u32 [#allocation5], 4
      %s26 = int_to_ptr.vmem [resolvable:$true] %s25
      %31 = dma.hbm_to_vmem [thread:$0]  %s1, 4096, %s26, [#allocation6], 64, 64, 4
    $region9: #{tpu_custom_call.1} parent=1 // pred_fallthru
      _
    // Predicated region
    $region10: #{tpu_custom_call.1} parent=1 // pred_check
      _
    $region11: #{tpu_custom_call.1} parent=1 // pred_check_branch
      %33 = sbr.rel (0) target = $region13
    $region12: #{tpu_custom_call.1} parent=1 // pred_region
      %34 = dma.done [#allocation3], 512
    $region13: #{tpu_custom_call.1} parent=1 // pred_fallthru
      _
    // Predicated region
    $region14: #{tpu_custom_call.1} parent=1 // pred_check
      _
    $region15: #{tpu_custom_call.1} parent=1 // pred_check_branch
      %36 = sbr.rel (0) target = $region17
    $region16: #{tpu_custom_call.1} parent=1 // pred_region
      %37 = dma.done [#allocation6], 4096
    $region17: #{tpu_custom_call.1} parent=1 // pred_fallthru
      _
    %v41 = vld [vmem:[#allocation2] sm:$0xff]
    %v42 = vld [vmem:[#allocation2 + $0x8] sm:$0xff]
    %v43 = vld [vmem:[#allocation2 + $0x10] sm:$0xff]
    %v44 = vld [vmem:[#allocation2 + $0x18] sm:$0xff]
    %vm45 = vcmp.eq.s32.totalorder %v41, 0
    %vm46 = vcmp.eq.s32.totalorder %v42, 0
    %vm47 = vcmp.eq.s32.totalorder %v43, 0
    %vm48 = vcmp.eq.s32.totalorder %v44, 0
    %v49 = vsel %vm45, 1, 0
    %v50 = vsel %vm46, 1, 0
    %v51 = vsel %vm47, 1, 0
    %v52 = vsel %vm48, 1, 0
    %v53 = vcvt.s32.f32 %v49
    %v54 = vcvt.s32.f32 %v50
    %v55 = vcvt.s32.f32 %v51
    %v56 = vcvt.s32.f32 %v52
    %v57 = vpack.c.bf16 %v53, %v53
    %v58 = vpack.c.bf16 %v54, %v54
    %v59 = vpack.c.bf16 %v55, %v55
    %v60 = vpack.c.bf16 %v56, %v56
    %v61 = vld [vmem:[#allocation5] sm:$0xf]
    %v62 = vld [vmem:[#allocation5 + $0x4] sm:$0xf]
    %v63 = vld [vmem:[#allocation5 + $0x8] sm:$0xf]
    %v64 = vld [vmem:[#allocation5 + $0xc] sm:$0xf]
    %v65 = vld [vmem:[#allocation5 + $0x10] sm:$0xf]
    %v66 = vld [vmem:[#allocation5 + $0x14] sm:$0xf]
    %v67 = vld [vmem:[#allocation5 + $0x18] sm:$0xf]
    %v68 = vld [vmem:[#allocation5 + $0x1c] sm:$0xf]
    %v69 = vld [vmem:[#allocation5 + $0x20] sm:$0xf]
    %v70 = vld [vmem:[#allocation5 + $0x24] sm:$0xf]
    %v71 = vld [vmem:[#allocation5 + $0x28] sm:$0xf]
    %v72 = vld [vmem:[#allocation5 + $0x2c] sm:$0xf]
    %v73 = vld [vmem:[#allocation5 + $0x30] sm:$0xf]
    %v74 = vld [vmem:[#allocation5 + $0x34] sm:$0xf]
    %v75 = vld [vmem:[#allocation5 + $0x38] sm:$0xf]
    %v76 = vld [vmem:[#allocation5 + $0x3c] sm:$0xf]
    %v77 = vld [vmem:[#allocation5 + $0x40] sm:$0xf]
    %v78 = vld [vmem:[#allocation5 + $0x44] sm:$0xf]
    %v79 = vld [vmem:[#allocation5 + $0x48] sm:$0xf]
    %v80 = vld [vmem:[#allocation5 + $0x4c] sm:$0xf]
    %v81 = vld [vmem:[#allocation5 + $0x50] sm:$0xf]
    %v82 = vld [vmem:[#allocation5 + $0x54] sm:$0xf]
    %v83 = vld [vmem:[#allocation5 + $0x58] sm:$0xf]
    %v84 = vld [vmem:[#allocation5 + $0x5c] sm:$0xf]
    %v85 = vld [vmem:[#allocation5 + $0x60] sm:$0xf]
    %v86 = vld [vmem:[#allocation5 + $0x64] sm:$0xf]
    %v87 = vld [vmem:[#allocation5 + $0x68] sm:$0xf]
    %v88 = vld [vmem:[#allocation5 + $0x6c] sm:$0xf]
    %v89 = vld [vmem:[#allocation5 + $0x70] sm:$0xf]
    %v90 = vld [vmem:[#allocation5 + $0x74] sm:$0xf]
    %v91 = vld [vmem:[#allocation5 + $0x78] sm:$0xf]
    %v92 = vld [vmem:[#allocation5 + $0x7c] sm:$0xf]
    %v93 = vld [vmem:[#allocation5 + $0x80] sm:$0xf]
    %v94 = vld [vmem:[#allocation5 + $0x84] sm:$0xf]
    %v95 = vld [vmem:[#allocation5 + $0x88] sm:$0xf]
    %v96 = vld [vmem:[#allocation5 + $0x8c] sm:$0xf]
    %v97 = vld [vmem:[#allocation5 + $0x90] sm:$0xf]
    %v98 = vld [vmem:[#allocation5 + $0x94] sm:$0xf]
    %v99 = vld [vmem:[#allocation5 + $0x98] sm:$0xf]
    %v100 = vld [vmem:[#allocation5 + $0x9c] sm:$0xf]
    %v101 = vld [vmem:[#allocation5 + $0xa0] sm:$0xf]
    %v102 = vld [vmem:[#allocation5 + $0xa4] sm:$0xf]
    %v103 = vld [vmem:[#allocation5 + $0xa8] sm:$0xf]
    %v104 = vld [vmem:[#allocation5 + $0xac] sm:$0xf]
    %v105 = vld [vmem:[#allocation5 + $0xb0] sm:$0xf]
    %v106 = vld [vmem:[#allocation5 + $0xb4] sm:$0xf]
    %v107 = vld [vmem:[#allocation5 + $0xb8] sm:$0xf]
    %v108 = vld [vmem:[#allocation5 + $0xbc] sm:$0xf]
    %v109 = vld [vmem:[#allocation5 + $0xc0] sm:$0xf]
    %v110 = vld [vmem:[#allocation5 + $0xc4] sm:$0xf]
    %v111 = vld [vmem:[#allocation5 + $0xc8] sm:$0xf]
    %v112 = vld [vmem:[#allocation5 + $0xcc] sm:$0xf]
    %v113 = vld [vmem:[#allocation5 + $0xd0] sm:$0xf]
    %v114 = vld [vmem:[#allocation5 + $0xd4] sm:$0xf]
    %v115 = vld [vmem:[#allocation5 + $0xd8] sm:$0xf]
    %v116 = vld [vmem:[#allocation5 + $0xdc] sm:$0xf]
    %v117 = vld [vmem:[#allocation5 + $0xe0] sm:$0xf]
    %v118 = vld [vmem:[#allocation5 + $0xe4] sm:$0xf]
    %v119 = vld [vmem:[#allocation5 + $0xe8] sm:$0xf]
    %v120 = vld [vmem:[#allocation5 + $0xec] sm:$0xf]
    %v121 = vld [vmem:[#allocation5 + $0xf0] sm:$0xf]
    %v122 = vld [vmem:[#allocation5 + $0xf4] sm:$0xf]
    %v123 = vld [vmem:[#allocation5 + $0xf8] sm:$0xf]
    %v124 = vld [vmem:[#allocation5 + $0xfc] sm:$0xf]
    %v189 = vunpack.c.l.b16 %v61
    %v190 = vunpack.c.l.b16 %v62
    %v191 = vunpack.c.l.b16 %v63
    %v192 = vunpack.c.l.b16 %v64
    %v193 = vunpack.c.l.b16 %v65
    %v194 = vunpack.c.l.b16 %v66
    %v195 = vunpack.c.l.b16 %v67
    %v196 = vunpack.c.l.b16 %v68
    %v197 = vunpack.c.l.b16 %v69
    %v198 = vunpack.c.l.b16 %v70
    %v199 = vunpack.c.l.b16 %v71
    %v200 = vunpack.c.l.b16 %v72
    %v201 = vunpack.c.l.b16 %v73
    %v202 = vunpack.c.l.b16 %v74
    %v203 = vunpack.c.l.b16 %v75
    %v204 = vunpack.c.l.b16 %v76
    %v205 = vunpack.c.l.b16 %v77
    %v206 = vunpack.c.l.b16 %v78
    %v207 = vunpack.c.l.b16 %v79
    %v208 = vunpack.c.l.b16 %v80
    %v209 = vunpack.c.l.b16 %v81
    %v210 = vunpack.c.l.b16 %v82
    %v211 = vunpack.c.l.b16 %v83
    %v212 = vunpack.c.l.b16 %v84
    %v213 = vunpack.c.l.b16 %v85
    %v214 = vunpack.c.l.b16 %v86
    %v215 = vunpack.c.l.b16 %v87
    %v216 = vunpack.c.l.b16 %v88
    %v217 = vunpack.c.l.b16 %v89
    %v218 = vunpack.c.l.b16 %v90
    %v219 = vunpack.c.l.b16 %v91
    %v220 = vunpack.c.l.b16 %v92
    %v221 = vunpack.c.l.b16 %v93
    %v222 = vunpack.c.l.b16 %v94
    %v223 = vunpack.c.l.b16 %v95
    %v224 = vunpack.c.l.b16 %v96
    %v225 = vunpack.c.l.b16 %v97
    %v226 = vunpack.c.l.b16 %v98
    %v227 = vunpack.c.l.b16 %v99
    %v228 = vunpack.c.l.b16 %v100
    %v229 = vunpack.c.l.b16 %v101
    %v230 = vunpack.c.l.b16 %v102
    %v231 = vunpack.c.l.b16 %v103
    %v232 = vunpack.c.l.b16 %v104
    %v233 = vunpack.c.l.b16 %v105
    %v234 = vunpack.c.l.b16 %v106
    %v235 = vunpack.c.l.b16 %v107
    %v236 = vunpack.c.l.b16 %v108
    %v237 = vunpack.c.l.b16 %v109
    %v238 = vunpack.c.l.b16 %v110
    %v239 = vunpack.c.l.b16 %v111
    %v240 = vunpack.c.l.b16 %v112
    %v241 = vunpack.c.l.b16 %v113
    %v242 = vunpack.c.l.b16 %v114
    %v243 = vunpack.c.l.b16 %v115
    %v244 = vunpack.c.l.b16 %v116
    %v245 = vunpack.c.l.b16 %v117
    %v246 = vunpack.c.l.b16 %v118
    %v247 = vunpack.c.l.b16 %v119
    %v248 = vunpack.c.l.b16 %v120
    %v249 = vunpack.c.l.b16 %v121
    %v250 = vunpack.c.l.b16 %v122
    %v251 = vunpack.c.l.b16 %v123
    %v252 = vunpack.c.l.b16 %v124
    %v253 = vpack.c.b16 %v190, %v189
    %v254 = vpack.c.b16 %v192, %v191
    %v255 = vpack.c.b16 %v194, %v193
    %v256 = vpack.c.b16 %v196, %v195
    %v257 = vpack.c.b16 %v198, %v197
    %v258 = vpack.c.b16 %v200, %v199
    %v259 = vpack.c.b16 %v202, %v201
    %v260 = vpack.c.b16 %v204, %v203
    %v261 = vpack.c.b16 %v206, %v205
    %v262 = vpack.c.b16 %v208, %v207
    %v263 = vpack.c.b16 %v210, %v209
    %v264 = vpack.c.b16 %v212, %v211
    %v265 = vpack.c.b16 %v214, %v213
    %v266 = vpack.c.b16 %v216, %v215
    %v267 = vpack.c.b16 %v218, %v217
    %v268 = vpack.c.b16 %v220, %v219
    %v269 = vpack.c.b16 %v222, %v221
    %v270 = vpack.c.b16 %v224, %v223
    %v271 = vpack.c.b16 %v226, %v225
    %v272 = vpack.c.b16 %v228, %v227
    %v273 = vpack.c.b16 %v230, %v229
    %v274 = vpack.c.b16 %v232, %v231
    %v275 = vpack.c.b16 %v234, %v233
    %v276 = vpack.c.b16 %v236, %v235
    %v277 = vpack.c.b16 %v238, %v237
    %v278 = vpack.c.b16 %v240, %v239
    %v279 = vpack.c.b16 %v242, %v241
    %v280 = vpack.c.b16 %v244, %v243
    %v281 = vpack.c.b16 %v246, %v245
    %v282 = vpack.c.b16 %v248, %v247
    %v283 = vpack.c.b16 %v250, %v249
    %v284 = vpack.c.b16 %v252, %v251
    %317 = vmatprep.subr.bf16.mxu0 0
    %318 = vmatpush1.bf16.msra.mxu0 %v253
    %319 = vmatprep.subr.bf16.mxu0 0
    %320 = vmatpush1.bf16.msra.mxu0 %v254
    %321 = vmatprep.subr.bf16.mxu0 0
    %322 = vmatpush1.bf16.msra.mxu0 %v255
    %323 = vmatprep.subr.bf16.mxu0 0
    %324 = vmatpush1.bf16.msra.mxu0 %v256
    %325 = vmatprep.subr.bf16.mxu0 0
    %326 = vmatpush1.bf16.msra.mxu0 %v257
    %327 = vmatprep.subr.bf16.mxu0 0
    %328 = vmatpush1.bf16.msra.mxu0 %v258
    %329 = vmatprep.subr.bf16.mxu0 0
    %330 = vmatpush1.bf16.msra.mxu0 %v259
    %331 = vmatprep.subr.bf16.mxu0 0
    %332 = vmatpush1.bf16.msra.mxu0 %v260
    %333 = vmatprep.subr.bf16.mxu0 0
    %334 = vmatpush1.bf16.msra.mxu0 %v261
    %335 = vmatprep.subr.bf16.mxu0 0
    %336 = vmatpush1.bf16.msra.mxu0 %v262
    %337 = vmatprep.subr.bf16.mxu0 0
    %338 = vmatpush1.bf16.msra.mxu0 %v263
    %339 = vmatprep.subr.bf16.mxu0 0
    %340 = vmatpush1.bf16.msra.mxu0 %v264
    %341 = vmatprep.subr.bf16.mxu0 0
    %342 = vmatpush1.bf16.msra.mxu0 %v265
    %343 = vmatprep.subr.bf16.mxu0 0
    %344 = vmatpush1.bf16.msra.mxu0 %v266
    %345 = vmatprep.subr.bf16.mxu0 0
    %346 = vmatpush1.bf16.msra.mxu0 %v267
    %347 = vmatprep.subr.bf16.mxu0 0
    %348 = vmatpush1.bf16.msra.mxu0 %v268
    %349 = vmatprep.mubr.bf16.mxu0 %v58
    %350 = vmatmul.mubr.bf16.gmra.mrb[0].mxu0 %v57
    %v351 = vpop.f32.mrb[0].mxu0
    %v352 = vadd.f32 0.0, %v351
    %v353 = vpop.f32.mrb[0].mxu0
    %v354 = vpop.f32.mrb[0].mxu0
    %v355 = vpop.f32.mrb[0].mxu0
    %356 = vdwg.mxu0
    %357 = vmatprep.subr.bf16.mxu0 0
    %358 = vmatpush1.bf16.msra.mxu0 %v269
    %359 = vmatprep.subr.bf16.mxu0 0
    %360 = vmatpush1.bf16.msra.mxu0 %v270
    %361 = vmatprep.subr.bf16.mxu0 0
    %362 = vmatpush1.bf16.msra.mxu0 %v271
    %363 = vmatprep.subr.bf16.mxu0 0
    %364 = vmatpush1.bf16.msra.mxu0 %v272
    %365 = vmatprep.subr.bf16.mxu0 0
    %366 = vmatpush1.bf16.msra.mxu0 %v273
    %367 = vmatprep.subr.bf16.mxu0 0
    %368 = vmatpush1.bf16.msra.mxu0 %v274
    %369 = vmatprep.subr.bf16.mxu0 0
    %370 = vmatpush1.bf16.msra.mxu0 %v275
    %371 = vmatprep.subr.bf16.mxu0 0
    %372 = vmatpush1.bf16.msra.mxu0 %v276
    %373 = vmatprep.subr.bf16.mxu0 0
    %374 = vmatpush1.bf16.msra.mxu0 %v277
    %375 = vmatprep.subr.bf16.mxu0 0
    %376 = vmatpush1.bf16.msra.mxu0 %v278
    %377 = vmatprep.subr.bf16.mxu0 0
    %378 = vmatpush1.bf16.msra.mxu0 %v279
    %379 = vmatprep.subr.bf16.mxu0 0
    %380 = vmatpush1.bf16.msra.mxu0 %v280
    %381 = vmatprep.subr.bf16.mxu0 0
    %382 = vmatpush1.bf16.msra.mxu0 %v281
    %383 = vmatprep.subr.bf16.mxu0 0
    %384 = vmatpush1.bf16.msra.mxu0 %v282
    %385 = vmatprep.subr.bf16.mxu0 0
    %386 = vmatpush1.bf16.msra.mxu0 %v283
    %387 = vmatprep.subr.bf16.mxu0 0
    %388 = vmatpush1.bf16.msra.mxu0 %v284
    %389 = vmatprep.mubr.bf16.mxu0 %v60
    %390 = vmatmul.mubr.bf16.gmra.mrb[0].mxu0 %v59
    %v391 = vpop.f32.mrb[0].mxu0
    %v392 = vadd.f32 %v352, %v391
    %v393 = vpop.f32.mrb[0].mxu0
    %v394 = vpop.f32.mrb[0].mxu0
    %v395 = vpop.f32.mrb[0].mxu0
    %396 = vdwg.mxu0
    %vm397 = vcmp.gt.f32.partialorder %v392, 0.5
    %vm398 = vmpackc.low %vm397, %vm397
    %vm399 = vmpackc.even %vm398, %vm398
    %v400 = vsel %vm399, 16843009, 0
    %401 = vst [vmem:[#allocation7] sm:$0x3] %v400
    // Predicated region
    $region18: #{tpu_custom_call.1} parent=1 // pred_check
      _
    $region19: #{tpu_custom_call.1} parent=1 // pred_check_branch
      %403 = sbr.rel (0) target = $region21
    $region20: #{tpu_custom_call.1} parent=1 // pred_region
      %s405 = ssub.s32 32, 32
      %406 = vsyncadd [#allocation4], %s405
      %s408 = sshll.u32 [#allocation7], 4
      %s409 = int_to_ptr.vmem [resolvable:$true] %s408
      %411 = dma.vmem_to_hbm [thread:$0]  %s409, 32, %s2, [#allocation4]
    $region21: #{tpu_custom_call.1} parent=1 // pred_fallthru
      _
    // Predicated region
    $region22: #{tpu_custom_call.1} parent=1 // pred_check
      _
    $region23: #{tpu_custom_call.1} parent=1 // pred_check_branch
      %413 = sbr.rel (0) target = $region25
    $region24: #{tpu_custom_call.1} parent=1 // pred_region
      %414 = dma.done [#allocation4], 32
    $region25: #{tpu_custom_call.1} parent=1 // pred_fallthru
      _
    %415 = vsyncpa [#allocation3], 1
    %416 = vsyncpa [#allocation6], 1
    %417 = vsyncpa [#allocation4], 1

</llo_original>
